<compile_context>
chip_gen: v6e
topology: v6e:2x2x1
jax: 0.10.0
libtpu: 0.0.40
codegen_flags: <defaults>
</compile_context>

<pallas_src>
import functools

import jax
import jax.numpy as jnp
from jax.experimental import pallas as pl
from jax.experimental.pallas import tpu as pltpu

IN_F = 5
HID_F = 10
OUT_F = 1


def mlp_kernel(xT_ref, w1_ref, w2c_ref, b1_ref, b2_ref, o_ref):
    xT = xT_ref[...]           # (IN_F, TILE_B)   batch on the lane axis
    w1 = w1_ref[...]           # (HID_F, IN_F)    PyTorch (out, in) layout
    w2c = w2c_ref[...]         # (HID_F, 1)       W2 transposed to a column

    # Hidden layer: h = relu(W1 @ xT + b1) as IN_F unrolled rank-1 VPU FMAs.
    h = b1_ref[...] + w1[:, 0:1] * xT[0:1, :]            # (HID_F, TILE_B)
    for k in range(1, IN_F):
        h = h + w1[:, k:k + 1] * xT[k:k + 1, :]
    h = jnp.maximum(h, 0.0)

    # Output layer: y = sigmoid(W2 @ h + b2).
    # One VPU multiply + one cross-sublane (XLU) reduction; b2 is a scalar from SMEM.
    y = jnp.sum(w2c * h, axis=0, keepdims=True) + b2_ref[0]   # (OUT_F, TILE_B)
    o_ref[...] = jax.nn.sigmoid(y).astype(o_ref.dtype)


def _round_up(n, m):
    return ((n + m - 1) // m) * m


@functools.partial(jax.jit, static_argnames=("tile_b",))
def simple_nn_forward(x, w1, b1, w2, b2, *, tile_b=None):
    """x: (B, 5); w1: (10, 5); b1: (10,); w2: (1, 10); b2: (1,). Returns (B, 1)."""
    B = x.shape[0]
    if tile_b is None:
        # Large tiles amortize the ~0.35 us/grid-step overhead; per-tile footprint is
        # only ~tile_b * 24 B so 4096 easily fits on every generation (incl. v7x).
        tile_b = min(4096, _round_up(B, 128))
    B_pad = _round_up(B, tile_b)

    # Wrapper-side layout plumbing: batch on lanes, pad to a whole number of tiles.
    xT = jnp.pad(x.astype(jnp.float32).T, ((0, 0), (0, B_pad - B)))   # (IN_F, B_pad)
    w1_f = w1.astype(jnp.float32)                                     # (HID_F, IN_F)
    w2_col = w2.astype(jnp.float32).reshape(OUT_F, HID_F).T           # (HID_F, OUT_F)
    b1_col = b1.astype(jnp.float32).reshape(HID_F, 1)
    b2_s = b2.astype(jnp.float32).reshape(OUT_F)

    yT = pl.pallas_call(
        mlp_kernel,
        out_shape=jax.ShapeDtypeStruct((OUT_F, B_pad), jnp.float32),
        grid=(B_pad // tile_b,),
        in_specs=[
            pl.BlockSpec((IN_F, tile_b), lambda i: (0, i)),      # x: streamed per tile
            pl.BlockSpec((HID_F, IN_F), lambda i: (0, 0)),       # W1: VMEM-resident
            pl.BlockSpec((HID_F, OUT_F), lambda i: (0, 0)),      # W2^T: VMEM-resident
            pl.BlockSpec((HID_F, 1), lambda i: (0, 0)),          # b1: VMEM-resident
            pl.BlockSpec(memory_space=pltpu.MemorySpace.SMEM),   # b2: scalar in SMEM
        ],
        out_specs=pl.BlockSpec((OUT_F, tile_b), lambda i: (0, i)),
        compiler_params=pltpu.CompilerParams(
            dimension_semantics=("parallel",),   # batch tiles are independent
        ),
    )(xT, w1_f, w2_col, b1_col, b2_s)

    return yT[:, :B].T                                           # (B, OUT_F)


def init_params(key):
    """Deterministic init mirroring PyTorch's default Linear init (uniform +/- 1/sqrt(fan_in)).
    Weights are kept in PyTorch's native (out_features, in_features) layout."""
    k1, k2, k3, k4 = jax.random.split(key, 4)
    bound1 = 1.0 / (IN_F ** 0.5)
    bound2 = 1.0 / (HID_F ** 0.5)
    w1 = jax.random.uniform(k1, (HID_F, IN_F), jnp.float32, -bound1, bound1)
    b1 = jax.random.uniform(k2, (HID_F,), jnp.float32, -bound1, bound1)
    w2 = jax.random.uniform(k3, (OUT_F, HID_F), jnp.float32, -bound2, bound2)
    b2 = jax.random.uniform(k4, (OUT_F,), jnp.float32, -bound2, bound2)
    return w1, b1, w2, b2


if __name__ == "__main__":
    key = jax.random.PRNGKey(0)
    k_x, k_p = jax.random.split(key)

    # Small batch, deliberately NOT a multiple of the tile so grid + padding paths run.
    B = 300
    x = jax.random.normal(k_x, (B, IN_F), jnp.float32)
    w1, b1, w2, b2 = init_params(k_p)

    out = simple_nn_forward(x, w1, b1, w2, b2, tile_b=128)   # grid of 3 batch tiles
    out = jax.block_until_ready(out)

    # Pure-JAX reference of the PyTorch forward pass.
    ref = jax.nn.sigmoid(jnp.maximum(x @ w1.T + b1, 0.0) @ w2.T + b2)
    assert out.shape == (B, OUT_F)
    assert jnp.allclose(out, ref, atol=1e-5, rtol=1e-5)

    # Also exercise the default (single-tile) path.
    out2 = jax.block_until_ready(simple_nn_forward(x, w1, b1, w2, b2))
    assert jnp.allclose(out2, ref, atol=1e-5, rtol=1e-5)

    print("KERNEL_OK")
</pallas_src>

<mosaic_0001>
module attributes {stable_mosaic.version = 11 : i64} {
  func.func @mlp_kernel(%arg0: i32, %arg1: memref<5x128xf32, #tpu.memory_space<vmem>>, %arg2: memref<10x5xf32, #tpu.memory_space<vmem>>, %arg3: memref<10x1xf32, #tpu.memory_space<vmem>>, %arg4: memref<10x1xf32, #tpu.memory_space<vmem>>, %arg5: memref<1xf32, #tpu.memory_space<smem>>, %arg6: memref<1x128xf32, #tpu.memory_space<vmem>>) attributes {dimension_semantics = [#tpu.dimension_semantics<parallel>], iteration_bounds = array<i64: 3>, scalar_prefetch = 0 : i64, scratch_operands = 0 : i64, tpu.core_type = #tpu.core_type<tc>, window_params = [{transform_indices = @transform_0, window_bounds = array<i64: 5, 128>}, {pipeline_mode = #tpu.pipeline_mode<synchronous>, transform_indices = @transform_1, window_bounds = array<i64: 10, 5>}, {pipeline_mode = #tpu.pipeline_mode<synchronous>, transform_indices = @transform_2, window_bounds = array<i64: 10, 1>}, {pipeline_mode = #tpu.pipeline_mode<synchronous>, transform_indices = @transform_3, window_bounds = array<i64: 10, 1>}, {transform_indices = @transform_4, window_bounds = array<i64: 1>}, {transform_indices = @transform_5, window_bounds = array<i64: 1, 128>}]} {
    %c0 = arith.constant 0 : index
    %c0_0 = arith.constant 0 : index
    %0 = vector.load %arg1[%c0, %c0_0] : memref<5x128xf32, #tpu.memory_space<vmem>>, vector<5x128xf32>
    %c0_1 = arith.constant 0 : index
    %c0_2 = arith.constant 0 : index
    %1 = vector.load %arg2[%c0_1, %c0_2] : memref<10x5xf32, #tpu.memory_space<vmem>>, vector<10x5xf32>
    %c0_3 = arith.constant 0 : index
    %c0_4 = arith.constant 0 : index
    %2 = vector.load %arg3[%c0_3, %c0_4] : memref<10x1xf32, #tpu.memory_space<vmem>>, vector<10x1xf32>
    %c0_5 = arith.constant 0 : index
    %c0_6 = arith.constant 0 : index
    %3 = vector.load %arg4[%c0_5, %c0_6] : memref<10x1xf32, #tpu.memory_space<vmem>>, vector<10x1xf32>
    %4 = vector.extract_strided_slice %1 {offsets = [0, 0], sizes = [10, 1], strides = [1, 1]} : vector<10x5xf32> to vector<10x1xf32>
    %5 = vector.extract_strided_slice %0 {offsets = [0, 0], sizes = [1, 128], strides = [1, 1]} : vector<5x128xf32> to vector<1x128xf32>
    %6 = vector.broadcast %4 : vector<10x1xf32> to vector<10x128xf32>
    %7 = vector.broadcast %5 : vector<1x128xf32> to vector<10x128xf32>
    %8 = arith.mulf %6, %7 : vector<10x128xf32>
    %9 = vector.broadcast %3 : vector<10x1xf32> to vector<10x128xf32>
    %10 = arith.addf %9, %8 : vector<10x128xf32>
    %11 = vector.extract_strided_slice %1 {offsets = [0, 1], sizes = [10, 1], strides = [1, 1]} : vector<10x5xf32> to vector<10x1xf32>
    %12 = vector.extract_strided_slice %0 {offsets = [1, 0], sizes = [1, 128], strides = [1, 1]} : vector<5x128xf32> to vector<1x128xf32>
    %13 = vector.broadcast %11 : vector<10x1xf32> to vector<10x128xf32>
    %14 = vector.broadcast %12 : vector<1x128xf32> to vector<10x128xf32>
    %15 = arith.mulf %13, %14 : vector<10x128xf32>
    %16 = arith.addf %10, %15 : vector<10x128xf32>
    %17 = vector.extract_strided_slice %1 {offsets = [0, 2], sizes = [10, 1], strides = [1, 1]} : vector<10x5xf32> to vector<10x1xf32>
    %18 = vector.extract_strided_slice %0 {offsets = [2, 0], sizes = [1, 128], strides = [1, 1]} : vector<5x128xf32> to vector<1x128xf32>
    %19 = vector.broadcast %17 : vector<10x1xf32> to vector<10x128xf32>
    %20 = vector.broadcast %18 : vector<1x128xf32> to vector<10x128xf32>
    %21 = arith.mulf %19, %20 : vector<10x128xf32>
    %22 = arith.addf %16, %21 : vector<10x128xf32>
    %23 = vector.extract_strided_slice %1 {offsets = [0, 3], sizes = [10, 1], strides = [1, 1]} : vector<10x5xf32> to vector<10x1xf32>
    %24 = vector.extract_strided_slice %0 {offsets = [3, 0], sizes = [1, 128], strides = [1, 1]} : vector<5x128xf32> to vector<1x128xf32>
    %25 = vector.broadcast %23 : vector<10x1xf32> to vector<10x128xf32>
    %26 = vector.broadcast %24 : vector<1x128xf32> to vector<10x128xf32>
    %27 = arith.mulf %25, %26 : vector<10x128xf32>
    %28 = arith.addf %22, %27 : vector<10x128xf32>
    %29 = vector.extract_strided_slice %1 {offsets = [0, 4], sizes = [10, 1], strides = [1, 1]} : vector<10x5xf32> to vector<10x1xf32>
    %30 = vector.extract_strided_slice %0 {offsets = [4, 0], sizes = [1, 128], strides = [1, 1]} : vector<5x128xf32> to vector<1x128xf32>
    %31 = vector.broadcast %29 : vector<10x1xf32> to vector<10x128xf32>
    %32 = vector.broadcast %30 : vector<1x128xf32> to vector<10x128xf32>
    %33 = arith.mulf %31, %32 : vector<10x128xf32>
    %34 = arith.addf %28, %33 : vector<10x128xf32>
    %cst = arith.constant 0.000000e+00 : f32
    %35 = vector.broadcast %cst : f32 to vector<10x128xf32>
    %36 = arith.maximumf %34, %35 : vector<10x128xf32>
    %37 = vector.broadcast %2 : vector<10x1xf32> to vector<10x128xf32>
    %38 = arith.mulf %37, %36 : vector<10x128xf32>
    %cst_7 = arith.constant dense<0.000000e+00> : vector<128xf32>
    %39 = vector.multi_reduction <add>, %38, %cst_7 [0] : vector<10x128xf32> to vector<128xf32>
    %40 = vector.shape_cast %39 : vector<128xf32> to vector<1x128xf32>
    %c0_8 = arith.constant 0 : index
    %41 = memref.load %arg5[%c0_8] : memref<1xf32, #tpu.memory_space<smem>>
    %42 = vector.broadcast %41 : f32 to vector<1x128xf32>
    %43 = arith.addf %40, %42 : vector<1x128xf32>
    %44 = arith.negf %43 : vector<1x128xf32>
    %45 = math.exp %44 : vector<1x128xf32>
    %cst_9 = arith.constant 1.000000e+00 : f32
    %46 = vector.broadcast %cst_9 : f32 to vector<1x128xf32>
    %47 = arith.addf %46, %45 : vector<1x128xf32>
    %48 = arith.divf %46, %47 : vector<1x128xf32>
    %c0_10 = arith.constant 0 : index
    %c0_11 = arith.constant 0 : index
    %49 = vector.load %arg6[%c0_10, %c0_11] : memref<1x128xf32, #tpu.memory_space<vmem>>, vector<1x128xf32>
    tpu.vector_store %arg6[%c0_10, %c0_11], %48 {strides = array<i32>} : memref<1x128xf32, #tpu.memory_space<vmem>>, vector<1x128xf32>,
    return
  }
  func.func @transform_0(%arg0: i32) -> (i32, i32) {
    %c0_i32 = arith.constant 0 : i32
    %c0_i32_0 = arith.constant 0 : i32
    return %c0_i32, %arg0 : i32, i32
  }
  func.func @transform_1(%arg0: i32) -> (i32, i32) {
    %c0_i32 = arith.constant 0 : i32
    %c0_i32_0 = arith.constant 0 : i32
    %c0_i32_1 = arith.constant 0 : i32
    return %c0_i32, %c0_i32_0 : i32, i32
  }
  func.func @transform_2(%arg0: i32) -> (i32, i32) {
    %c0_i32 = arith.constant 0 : i32
    %c0_i32_0 = arith.constant 0 : i32
    %c0_i32_1 = arith.constant 0 : i32
    return %c0_i32, %c0_i32_0 : i32, i32
  }
  func.func @transform_3(%arg0: i32) -> (i32, i32) {
    %c0_i32 = arith.constant 0 : i32
    %c0_i32_0 = arith.constant 0 : i32
    %c0_i32_1 = arith.constant 0 : i32
    return %c0_i32, %c0_i32_0 : i32, i32
  }
  func.func @transform_4(%arg0: i32) -> i32 {
    %c0_i32 = arith.constant 0 : i32
    %c0_i32_0 = arith.constant 0 : i32
    return %c0_i32 : i32
  }
  func.func @transform_5(%arg0: i32) -> (i32, i32) {
    %c0_i32 = arith.constant 0 : i32
    %c0_i32_0 = arith.constant 0 : i32
    return %c0_i32, %arg0 : i32, i32
  }
}

</mosaic_0001>

<llo_original>
// kernel: simple_nn_forward.1
$region0: #{simple_nn_forward.1}
  #allocation0 [shape = 'u32[]', space=smem, size = 0x4, offset = 0x4, fixed_abs, tag = 'smem constant byte address 0x4 - core index']
  #allocation1 [shape = 'u32[144,128]{1,0:T(1,128)}', space=vmem, size = 0x12000, scoped, tag = 'internal scratch']
  #allocation2 [shape = 'f32[1]{0:T(128)S(6)}', space=smem, size = 0x200, scoped, tag = 'scoped memory for simple_nn_forward.1']
  %s0 = inlined_call_operand.vmem [shape: f32[5,384], index: 0, kind: input, shape index: {}]
  %s1 = inlined_call_operand.vmem [shape: f32[10,5], index: 1, kind: input, shape index: {}]
  %s2 = inlined_call_operand.vmem [shape: f32[10,1], index: 2, kind: input, shape index: {}]
  %s3 = inlined_call_operand.vmem [shape: f32[10,1], index: 3, kind: input, shape index: {}]
  %s4 = inlined_call_operand.<no memory space> [shape: f32[1], index: 4, kind: input, shape index: {}]
  %s5 = inlined_call_operand.vmem [shape: f32[1,384], index: 5, kind: output, shape index: {}]
  %s6 = sld [smem:[#allocation0]]
  $region53: #{simple_nn_forward.1} parent=0
    _
  %s8 = ssub.s32 1, %s6
  %s9 = scalar_select 0, %s8, %s6
  %10 = sst [smem:[#allocation2]] %s4
  loop: start=0, step=1, limit=5
  $region2: #{simple_nn_forward.1} parent=0 // loop_pre_header
    _
  $region3: #{simple_nn_forward.1} parent=0 // loop_header
    %s12 = sphi 0, %s16
    %p13 = scmp.ge.s32.totalorder %s12, 5
    %s22 = sphi 0, %s24
    %s25 = sphi 0, %s22
    %s26 = sphi 0, %s25
    %s42 = sphi 0, %s26
    %s46 = sphi 0, %s46
    %s48 = sphi 0, %s46
    %s49 = sphi 0, %s48
    %s63 = sphi 0, %s49
    %s67 = sphi 0, %s67
    %s69 = sphi 0, %s67
    %s70 = sphi 0, %s69
    %s84 = sphi 0, %s70
    %s88 = sphi 0, %s88
    %s90 = sphi 0, %s88
    %s91 = sphi 0, %s90
    %s105 = sphi 0, %s91
    %s109 = sphi 0, %s109
    %s111 = sphi 0, %s109
    %s112 = sphi 0, %s111
    %s126 = sphi 0, %s112
    %s132 = sphi 0, %s134
    %s135 = sphi 0, %s132
    %s136 = sphi 0, %s135
    %s152 = sphi 0, %s136
  $region4: #{simple_nn_forward.1} parent=0 // loop_header_branch
    %15 = sbr.rel (%p13) target = $region8
  $region5: #{simple_nn_forward.1} parent=0 // loop_body
    %s17 = ssub.s32 %s12, 1
    %s18 = ssub.s32 %s12, 2
    %s19 = sadd.s32 %s12, 1
    %s20 = ssub.s32 %s12, %s19
    %p21 = scmp.eq.s32.totalorder %s20, 0
    %s23 = sadd.s32 %s22, 1
    %s24 = scalar_select %p21, %s22, %s23
    %p27 = pneg %p21
    %p28 = scmp.eq.s32.totalorder %s12, 2
    %p29 = por %p27, %p28
    %p30 = scmp.ne.s32.totalorder %s22, %s25
    %p31 = scmp.eq.s32.totalorder %s12, 0
    %p32 = por %p30, %p31
    %p33 = scmp.ne.s32.totalorder %s22, %s25
    %p34 = scmp.eq.s32.totalorder %s17, 2
    %p35 = por %p33, %p34
    %p36 = scmp.ne.s32.totalorder %s25, %s26
    %p37 = scmp.eq.s32.totalorder %s17, 0
    %p38 = por %p36, %p37
    %p39 = scmp.ne.s32.totalorder %s25, %s26
    %p40 = scmp.eq.s32.totalorder %s18, 2
    %p41 = por %p39, %p40
    %p43 = scmp.ne.s32.totalorder %s26, %s42
    %p44 = scmp.eq.s32.totalorder %s18, 0
    %p45 = por %p43, %p44
    %s47 = sadd.s32 %s46, 1
    %p50 = scmp.eq.s32.totalorder %s12, 2
    %p51 = scmp.ne.s32.totalorder %s46, %s48
    %p52 = scmp.eq.s32.totalorder %s12, 0
    %p53 = por %p51, %p52
    %p54 = scmp.ne.s32.totalorder %s46, %s48
    %p55 = scmp.eq.s32.totalorder %s17, 2
    %p56 = por %p54, %p55
    %p57 = scmp.ne.s32.totalorder %s48, %s49
    %p58 = scmp.eq.s32.totalorder %s17, 0
    %p59 = por %p57, %p58
    %p60 = scmp.ne.s32.totalorder %s48, %s49
    %p61 = scmp.eq.s32.totalorder %s18, 2
    %p62 = por %p60, %p61
    %p64 = scmp.ne.s32.totalorder %s49, %s63
    %p65 = scmp.eq.s32.totalorder %s18, 0
    %p66 = por %p64, %p65
    %s68 = sadd.s32 %s67, 1
    %p71 = scmp.eq.s32.totalorder %s12, 2
    %p72 = scmp.ne.s32.totalorder %s67, %s69
    %p73 = scmp.eq.s32.totalorder %s12, 0
    %p74 = por %p72, %p73
    %p75 = scmp.ne.s32.totalorder %s67, %s69
    %p76 = scmp.eq.s32.totalorder %s17, 2
    %p77 = por %p75, %p76
    %p78 = scmp.ne.s32.totalorder %s69, %s70
    %p79 = scmp.eq.s32.totalorder %s17, 0
    %p80 = por %p78, %p79
    %p81 = scmp.ne.s32.totalorder %s69, %s70
    %p82 = scmp.eq.s32.totalorder %s18, 2
    %p83 = por %p81, %p82
    %p85 = scmp.ne.s32.totalorder %s70, %s84
    %p86 = scmp.eq.s32.totalorder %s18, 0
    %p87 = por %p85, %p86
    %s89 = sadd.s32 %s88, 1
    %p92 = scmp.eq.s32.totalorder %s12, 2
    %p93 = scmp.ne.s32.totalorder %s88, %s90
    %p94 = scmp.eq.s32.totalorder %s12, 0
    %p95 = por %p93, %p94
    %p96 = scmp.ne.s32.totalorder %s88, %s90
    %p97 = scmp.eq.s32.totalorder %s17, 2
    %p98 = por %p96, %p97
    %p99 = scmp.ne.s32.totalorder %s90, %s91
    %p100 = scmp.eq.s32.totalorder %s17, 0
    %p101 = por %p99, %p100
    %p102 = scmp.ne.s32.totalorder %s90, %s91
    %p103 = scmp.eq.s32.totalorder %s18, 2
    %p104 = por %p102, %p103
    %p106 = scmp.ne.s32.totalorder %s91, %s105
    %p107 = scmp.eq.s32.totalorder %s18, 0
    %p108 = por %p106, %p107
    %s110 = sadd.s32 %s109, 1
    %p113 = scmp.eq.s32.totalorder %s12, 2
    %p114 = scmp.ne.s32.totalorder %s109, %s111
    %p115 = scmp.eq.s32.totalorder %s12, 0
    %p116 = por %p114, %p115
    %p117 = scmp.ne.s32.totalorder %s109, %s111
    %p118 = scmp.eq.s32.totalorder %s17, 2
    %p119 = por %p117, %p118
    %p120 = scmp.ne.s32.totalorder %s111, %s112
    %p121 = scmp.eq.s32.totalorder %s17, 0
    %p122 = por %p120, %p121
    %p123 = scmp.ne.s32.totalorder %s111, %s112
    %p124 = scmp.eq.s32.totalorder %s18, 2
    %p125 = por %p123, %p124
    %p127 = scmp.ne.s32.totalorder %s112, %s126
    %p128 = scmp.eq.s32.totalorder %s18, 0
    %p129 = por %p127, %p128
    %s130 = ssub.s32 %s12, %s19
    %p131 = scmp.eq.s32.totalorder %s130, 0
    %s133 = sadd.s32 %s132, 1
    %s134 = scalar_select %p131, %s132, %s133
    %p137 = pneg %p131
    %p138 = scmp.eq.s32.totalorder %s12, 2
    %p139 = por %p137, %p138
    %p140 = scmp.ne.s32.totalorder %s132, %s135
    %p141 = scmp.eq.s32.totalorder %s12, 0
    %p142 = por %p140, %p141
    %p143 = scmp.ne.s32.totalorder %s132, %s135
    %p144 = scmp.eq.s32.totalorder %s17, 2
    %p145 = por %p143, %p144
    %p146 = scmp.ne.s32.totalorder %s135, %s136
    %p147 = scmp.eq.s32.totalorder %s17, 0
    %p148 = por %p146, %p147
    %p149 = scmp.ne.s32.totalorder %s135, %s136
    %p150 = scmp.eq.s32.totalorder %s18, 2
    %p151 = por %p149, %p150
    %p153 = scmp.ne.s32.totalorder %s136, %s152
    %p154 = scmp.eq.s32.totalorder %s18, 0
    %p155 = por %p153, %p154
    %p156 = scmp.le.s32.totalorder 1, %s12
    %p157 = scmp.lt.s32.totalorder %s12, 4
    %p158 = pnand %p156, %p157
    %p159 = pneg %p158
    // Predicated region
    $region9: #{simple_nn_forward.1} parent=5 // pred_check
      _
    $region10: #{simple_nn_forward.1} parent=5 // pred_check_branch
      %161 = sbr.rel (%p158) target = $region12
    $region11: #{simple_nn_forward.1} parent=5 // pred_region
      %s162 = ssub.s32 %s12, 1
      // Predicated region
      $region13: #{simple_nn_forward.1} parent=11 // pred_check
        %p163 = pneg %p59
      $region14: #{simple_nn_forward.1} parent=11 // pred_check_branch
        %165 = sbr.rel (%p163) target = $region16
      $region15: #{simple_nn_forward.1} parent=11 // pred_region
        _
      $region16: #{simple_nn_forward.1} parent=11 // pred_fallthru
        _
      // Predicated region
      $region17: #{simple_nn_forward.1} parent=11 // pred_check
        %p166 = pneg %p80
      $region18: #{simple_nn_forward.1} parent=11 // pred_check_branch
        %168 = sbr.rel (%p166) target = $region20
      $region19: #{simple_nn_forward.1} parent=11 // pred_region
        _
      $region20: #{simple_nn_forward.1} parent=11 // pred_fallthru
        _
      // Predicated region
      $region21: #{simple_nn_forward.1} parent=11 // pred_check
        %p169 = pneg %p101
      $region22: #{simple_nn_forward.1} parent=11 // pred_check_branch
        %171 = sbr.rel (%p169) target = $region24
      $region23: #{simple_nn_forward.1} parent=11 // pred_region
        _
      $region24: #{simple_nn_forward.1} parent=11 // pred_fallthru
        _
      // Predicated region
      $region25: #{simple_nn_forward.1} parent=11 // pred_check
        %p172 = pneg %p122
      $region26: #{simple_nn_forward.1} parent=11 // pred_check_branch
        %174 = sbr.rel (%p172) target = $region28
      $region27: #{simple_nn_forward.1} parent=11 // pred_region
        _
      $region28: #{simple_nn_forward.1} parent=11 // pred_fallthru
        _
    $region12: #{simple_nn_forward.1} parent=5 // pred_fallthru
      _
    %p175 = scmp.lt.s32.totalorder %s12, 3
    // Predicated region
    $region29: #{simple_nn_forward.1} parent=5 // pred_check
      %p176 = pneg %p175
    $region30: #{simple_nn_forward.1} parent=5 // pred_check_branch
      %178 = sbr.rel (%p176) target = $region32
    $region31: #{simple_nn_forward.1} parent=5 // pred_region
      // Predicated region
      $region33: #{simple_nn_forward.1} parent=31 // pred_check
        %p179 = pneg %p32
      $region34: #{simple_nn_forward.1} parent=31 // pred_check_branch
        %181 = sbr.rel (%p179) target = $region36
      $region35: #{simple_nn_forward.1} parent=31 // pred_region
        %p182 = scmp.lt.s32.totalorder %s12, 2
        %s183 = scalar_select %p182, %s12, 2
        %s184 = smul.addr %s183, 8
        %s185 = scalar_lea.vmem %s0, %s184
      $region36: #{simple_nn_forward.1} parent=31 // pred_fallthru
        _
    $region32: #{simple_nn_forward.1} parent=5 // pred_fallthru
      _
    %p186 = scmp.le.s32.totalorder 1, %s12
    %p187 = scmp.lt.s32.totalorder %s12, 4
    %p188 = pnand %p186, %p187
    %p189 = pneg %p188
    // Predicated region
    $region37: #{simple_nn_forward.1} parent=5 // pred_check
      _
    $region38: #{simple_nn_forward.1} parent=5 // pred_check_branch
      %191 = sbr.rel (%p188) target = $region40
    $region39: #{simple_nn_forward.1} parent=5 // pred_region
      %s192 = ssub.s32 %s12, 1
      %p193 = scmp.lt.s32.totalorder %s17, 2
      %s194 = scalar_select %p193, %s17, 2
      %s195 = smul.addr %s194, 8
      %s196 = scalar_lea.vmem %s0, %s195
      %p197 = pneg %p38
      %p198 = pneg %p35
      %p199 = pneg %p59
      %p200 = pneg %p56
      %p201 = pneg %p80
      %p202 = pneg %p77
      %p203 = pneg %p101
      %p204 = pneg %p98
      %p205 = pneg %p122
      %p206 = pneg %p119
      %p207 = pneg %p148
      %p208 = pneg %p145
      %p209 = scmp.lt.s32.totalorder %s17, 2
      %s210 = scalar_select %p209, %s17, 2
      %s211 = scalar_lea.vmem %s5, %s210
      %p212 = scmp.lt.s32.totalorder %s17, 2
      %s213 = scalar_select %p212, %s17, 2
      %s214 = smul.addr %s213, 8
      %s215 = scalar_lea.vmem %s0, %s214
      %p216 = scmp.lt.s32.totalorder %s17, 2
      %s217 = scalar_select %p216, %s17, 2
      %s218 = scalar_lea.vmem %s5, %s217
      %v219 = vld [vmem:[%s215] sm:$0x1f]
      %v220 = vld [vmem:[%s1] sm:$0xff]
      %v221 = vld [vmem:[%s1 + $0x8] sm:$0x3]
      %v222 = vld [vmem:[%s2] sm:$0xff]
      %v223 = vld [vmem:[%s2 + $0x8] sm:$0x3]
      %v224 = vld [vmem:[%s3] sm:$0xff]
      %v225 = vld [vmem:[%s3 + $0x8] sm:$0x3]
      %227 = vset.pattern.permute.xlu0 0
      %228 = vperm.xlu0 %227, %v220
      %v229 = vpop.permute.xlu0 %228
      %232 = vset.pattern.permute.xlu0 0
      %233 = vperm.xlu0 %232, %v221
      %v234 = vpop.permute.xlu0 %233
      %v236 = vlaneseq
      %v237 = vshrl.u32 %v236, 7
      %v238 = vsub.s32 0, %v237
      %v239 = vrot.slane %v219, %v238
      %v240 = vmul.f32 %v229, %v239
      %v241 = vmul.f32 %v234, %v239
      %243 = vset.pattern.permute.xlu0 0
      %244 = vperm.xlu0 %243, %v224
      %v245 = vpop.permute.xlu0 %244
      %248 = vset.pattern.permute.xlu0 0
      %249 = vperm.xlu0 %248, %v225
      %v250 = vpop.permute.xlu0 %249
      %v252 = vadd.f32 %v245, %v240
      %v253 = vadd.f32 %v250, %v241
      %254 = vset.pattern.permute.xlu0 1
      %255 = vperm.xlu0 %254, %v220
      %v256 = vpop.permute.xlu0 %255
      %258 = vset.pattern.permute.xlu0 1
      %259 = vperm.xlu0 %258, %v221
      %v260 = vpop.permute.xlu0 %259
      %v262 = vlaneseq
      %v263 = vshrl.u32 %v262, 7
      %v264 = vsub.s32 1, %v263
      %v265 = vrot.slane %v219, %v264
      %v266 = vmul.f32 %v256, %v265
      %v267 = vmul.f32 %v260, %v265
      %v268 = vadd.f32 %v252, %v266
      %v269 = vadd.f32 %v253, %v267
      %270 = vset.pattern.permute.xlu0 2
      %271 = vperm.xlu0 %270, %v220
      %v272 = vpop.permute.xlu0 %271
      %274 = vset.pattern.permute.xlu0 2
      %275 = vperm.xlu0 %274, %v221
      %v276 = vpop.permute.xlu0 %275
      %v278 = vlaneseq
      %v279 = vshrl.u32 %v278, 7
      %v280 = vsub.s32 2, %v279
      %v281 = vrot.slane %v219, %v280
      %v282 = vmul.f32 %v272, %v281
      %v283 = vmul.f32 %v276, %v281
      %v284 = vadd.f32 %v268, %v282
      %v285 = vadd.f32 %v269, %v283
      %286 = vset.pattern.permute.xlu0 3
      %287 = vperm.xlu0 %286, %v220
      %v288 = vpop.permute.xlu0 %287
      %290 = vset.pattern.permute.xlu0 3
      %291 = vperm.xlu0 %290, %v221
      %v292 = vpop.permute.xlu0 %291
      %v294 = vlaneseq
      %v295 = vshrl.u32 %v294, 7
      %v296 = vsub.s32 3, %v295
      %v297 = vrot.slane %v219, %v296
      %v298 = vmul.f32 %v288, %v297
      %v299 = vmul.f32 %v292, %v297
      %v300 = vadd.f32 %v284, %v298
      %v301 = vadd.f32 %v285, %v299
      %302 = vset.pattern.permute.xlu0 4
      %303 = vperm.xlu0 %302, %v220
      %v304 = vpop.permute.xlu0 %303
      %306 = vset.pattern.permute.xlu0 4
      %307 = vperm.xlu0 %306, %v221
      %v308 = vpop.permute.xlu0 %307
      %v310 = vlaneseq
      %v311 = vshrl.u32 %v310, 7
      %v312 = vsub.s32 4, %v311
      %v313 = vrot.slane %v219, %v312
      %v314 = vmul.f32 %v304, %v313
      %v315 = vmul.f32 %v308, %v313
      %v316 = vadd.f32 %v300, %v314
      %v317 = vadd.f32 %v301, %v315
      %v318 = vmax.f32 %v316, 0.0
      %v319 = vmax.f32 %v317, 0.0
      %321 = vset.pattern.permute.xlu0 0
      %322 = vperm.xlu0 %321, %v222
      %v323 = vpop.permute.xlu0 %322
      %326 = vset.pattern.permute.xlu0 0
      %327 = vperm.xlu0 %326, %v223
      %v328 = vpop.permute.xlu0 %327
      %v330 = vmul.f32 %v323, %v318
      %v331 = vmul.f32 %v328, %v319
      %vm332 = vcmask 1041408
      %v333 = vsel %vm332, %v331, 0.0
      %v334 = vadd.f32 %v330, %v333
      %v335 = vrot.slane %v334, 4
      %v336 = vadd.f32 %v334, %v335
      %v337 = vrot.slane %v336, 2
      %v338 = vadd.f32 %v336, %v337
      %v339 = vrot.slane %v338, 1
      %v340 = vadd.f32 %v338, %v339
      %s341 = sld [smem:[#allocation2]]
      %v342 = vstv %s341
      %v343 = vadd.f32 %v340, %v342
      %v344 = vxor.u32 %v343, 2147483648
      %v345 = vmul.f32 %v344, 1.442695
      %v346 = vpow.pop %v345
      %v347 = vadd.f32 %v346, 1.0
      %v348 = vrcp.pop %v347
      %v349 = vmul.f32 1.0, %v348
      %350 = vst [vmem:[%s218] sm:$0x1] %v349
      %p351 = scmp.lt.s32.totalorder %s17, 2
      %s352 = scalar_select %p351, %s17, 2
      %s353 = scalar_lea.vmem %s5, %s352
      // Predicated region
      $region41: #{simple_nn_forward.1} parent=39 // pred_check
        %p354 = pneg %p145
      $region42: #{simple_nn_forward.1} parent=39 // pred_check_branch
        %356 = sbr.rel (%p354) target = $region44
      $region43: #{simple_nn_forward.1} parent=39 // pred_region
        _
      $region44: #{simple_nn_forward.1} parent=39 // pred_fallthru
        _
    $region40: #{simple_nn_forward.1} parent=5 // pred_fallthru
      _
    %p357 = scmp.le.s32.totalorder 2, %s12
    // Predicated region
    $region45: #{simple_nn_forward.1} parent=5 // pred_check
      %p358 = pneg %p357
    $region46: #{simple_nn_forward.1} parent=5 // pred_check_branch
      %360 = sbr.rel (%p358) target = $region48
    $region47: #{simple_nn_forward.1} parent=5 // pred_region
      %s361 = ssub.s32 %s12, 2
      // Predicated region
      $region49: #{simple_nn_forward.1} parent=47 // pred_check
        %p362 = pneg %p151
      $region50: #{simple_nn_forward.1} parent=47 // pred_check_branch
        %364 = sbr.rel (%p362) target = $region52
      $region51: #{simple_nn_forward.1} parent=47 // pred_region
        %p365 = scmp.lt.s32.totalorder %s18, 2
        %s366 = scalar_select %p365, %s18, 2
        %s367 = scalar_lea.vmem %s5, %s366
      $region52: #{simple_nn_forward.1} parent=47 // pred_fallthru
        _
    $region48: #{simple_nn_forward.1} parent=5 // pred_fallthru
      _
  $region6: #{simple_nn_forward.1} parent=0 // loop_footer
    %s16 = sadd.s32 1, %s12
  $region7: #{simple_nn_forward.1} parent=0 // loop_footer_branch
    %11 = sbr.rel target = $region3
  $region8: #{simple_nn_forward.1} parent=0 // loop_exit
    _

</llo_original>
